<compile_context>
chip_gen: v7x
topology: tpu7x:2x2x1
jax: 0.10.0
libtpu: 0.0.40
codegen_flags: <defaults>
</compile_context>

<pallas_src>
import jax
import jax.numpy as jnp
from jax.experimental import pallas as pl
from jax.experimental.pallas import tpu as pltpu

_LANE = 128


def _round_up(x, m):
    return (x + m - 1) // m * m


def _sublane_packing(dtype):
    """Rows per unmasked sublane group: 8 for 4-byte, 16 for 2-byte, 32 for 1-byte."""
    itemsize = max(1, jnp.dtype(dtype).itemsize)
    return 8 * max(1, 4 // itemsize)


def _vmem_info():
    """Returns (physical VMEM bytes, vmem_limit_bytes we will request)."""
    try:
        phys = int(pltpu.get_tpu_info().vmem_capacity_bytes)
    except Exception:
        phys = 64 * 1024 * 1024  # conservative fallback (v7x per-TC physical)
    # Tiles are budgeted against phys // 4; we explicitly raise the scoped
    # limit to phys // 2 so the budgeted double-buffered tiles always fit
    # (v5e's 16 MiB / v6e's 32 MiB scoped defaults could otherwise reject them).
    return phys, phys // 2


def _make_concat_kernel(dims, out_dtype):
    offsets, off = [], 0
    for d in dims:
        offsets.append(off)
        off += d
    aligned = all(d % _LANE == 0 for d in dims)

    def kernel(*refs):
        *in_refs, out_ref = refs
        if len(in_refs) == 1:
            out_ref[...] = in_refs[0][...].astype(out_dtype)
        elif aligned:
            # Every column offset is a 128-multiple -> each slab store is
            # already unmasked/lane-dense; skip the register concat (saves
            # XLU lane packing and K+1 live wide tiles).
            for r, d, o in zip(in_refs, dims, offsets):
                out_ref[:, o:o + d] = r[...].astype(out_dtype)
        else:
            # Narrow / unaligned features: build the full-width tile in
            # registers so the store is one unmasked full-width vst.
            out_ref[...] = jnp.concatenate(
                [r[...].astype(out_dtype) for r in in_refs], axis=-1)

    return kernel


def _choose_tile_n(n_rows, dims, in_itemsizes, out_itemsize, sublane, budget):
    total = sum(dims)
    # Per-row VMEM footprint, accounting for lane padding of every tile.
    in_row = sum(_round_up(d, _LANE) * isz for d, isz in zip(dims, in_itemsizes))
    out_row = _round_up(total, _LANE) * out_itemsize
    bytes_per_row = in_row + out_row
    # Double-buffered pipeline: 2 x (input tiles + output tile) live per step.
    cap = budget // max(1, 2 * bytes_per_row)
    cap = max(sublane, cap // sublane * sublane)

    # Never collapse to one giant step: target ~8 pipeline steps with a
    # ~512-row floor so the ~0.35us per-step overhead stays amortized.
    target_steps = 8
    floor_rows = _round_up(min(n_rows, 512), sublane)
    target = max(floor_rows, _round_up(pl.cdiv(n_rows, target_steps), sublane))
    tile_n = max(sublane, min(cap, target))

    # Keep the grid length even when > 1 so ("parallel",) splits the row axis
    # evenly across both v7x TensorCores.
    steps = pl.cdiv(n_rows, tile_n)
    if steps > 1 and steps % 2 == 1:
        steps += 1
        tile_n = max(sublane, _round_up(pl.cdiv(n_rows, steps), sublane))
    return tile_n


def concat_feat_list_pallas(feat_list, tile_n=None):
    """torch.cat(feat_list, -1) for a list of [N, D_k] node-feature arrays."""
    k = len(feat_list)
    if k == 1:
        # Identity concat: skip the kernel entirely (no HBM pass, no launch).
        return feat_list[0]

    n_rows = int(feat_list[0].shape[0])
    dims = [int(f.shape[1]) for f in feat_list]
    total = sum(dims)
    out_dtype = jnp.result_type(*[f.dtype for f in feat_list])
    out_itemsize = jnp.dtype(out_dtype).itemsize
    in_itemsizes = [jnp.dtype(f.dtype).itemsize for f in feat_list]

    sublane = max([_sublane_packing(out_dtype)]
                  + [_sublane_packing(f.dtype) for f in feat_list])

    phys, vmem_limit = _vmem_info()
    if tile_n is None:
        tile_n = _choose_tile_n(n_rows, dims, in_itemsizes, out_itemsize,
                                sublane, budget=phys // 4)

    grid = (pl.cdiv(n_rows, tile_n),)
    in_specs = [pl.BlockSpec((tile_n, d), lambda i: (i, 0)) for d in dims]
    out_spec = pl.BlockSpec((tile_n, total), lambda i: (i, 0))

    bytes_accessed = (sum(n_rows * d * isz for d, isz in zip(dims, in_itemsizes))
                      + n_rows * total * out_itemsize)

    return pl.pallas_call(
        _make_concat_kernel(dims, out_dtype),
        out_shape=jax.ShapeDtypeStruct((n_rows, total), out_dtype),
        grid=grid,
        in_specs=in_specs,
        out_specs=out_spec,
        compiler_params=pltpu.CompilerParams(
            dimension_semantics=("parallel",),
            vmem_limit_bytes=int(vmem_limit),
        ),
        cost_estimate=pl.CostEstimate(
            flops=0, transcendentals=0, bytes_accessed=int(bytes_accessed)),
    )(*feat_list)


class KernelBase:
    """JAX/Pallas port of the PyTorch KernelBase module (base class: no layers)."""

    def __init__(self, net_params):
        self.in_dim = net_params["in_dim"]
        self.n_iter = net_params["n_iter"]
        # .get instead of .pop to avoid mutating the caller's dict (forward
        # semantics unchanged).
        self.residual = net_params.get("residual", False)
        # Base class has an empty nn.ModuleList; subclasses would populate it.
        self.layers = []
        self.dims = [self.in_dim] * (self.n_iter + 1)
        self.normalizer = None

    def forward(self, graph, node_feat, edge_feat, snorm_n, snorm_e):
        if self.normalizer:
            # TODO(synk): normalizer is an externally-set callable in the
            # original module (set_normalizer); base class leaves it None.
            node_feat = self.normalizer(node_feat)
        feat_list = [node_feat]
        for layer in self.layers:
            # TODO(synk): per-iteration kernel layers exist only in subclasses;
            # the base-class ModuleList is empty (no-op loop).  Subclasses
            # should ideally write each iteration's features straight into its
            # column slab of a preallocated (N, sum(D_k)) buffer to avoid the
            # concat pass entirely.
            graph, node_feat = layer(graph, node_feat)
            feat_list.append(node_feat)
        node_feat = concat_feat_list_pallas(feat_list)  # Pallas hot path (K>1)
        graph["ndata"]["h"] = node_feat
        return graph

    def set_normalizer(self, normalizer):
        self.normalizer = normalizer


if __name__ == "__main__":
    key = jax.random.PRNGKey(0)
    k_nf, k_ef, k_extra, k_big = jax.random.split(key, 4)

    # Small synthetic graph: 64 nodes, feature dim 32, a few edges.
    N, D, E = 64, 32, 128
    node_feat = jax.random.normal(k_nf, (N, D), dtype=jnp.float32)
    edge_feat = jax.random.normal(k_ef, (E, D), dtype=jnp.float32)
    snorm_n = jnp.ones((N, 1), dtype=jnp.float32)
    snorm_e = jnp.ones((E, 1), dtype=jnp.float32)

    # Minimal stand-in for a DGL graph: a dict with ndata storage.
    graph = {"ndata": {}, "num_nodes": N, "num_edges": E}

    net_params = {"in_dim": D, "n_iter": 3, "residual": True}
    model = KernelBase(net_params)

    # 1) Base-class forward: K == 1 -> fast path (identity, no kernel launch).
    graph = model.forward(graph, node_feat, edge_feat, snorm_n, snorm_e)
    h = jax.block_until_ready(graph["ndata"]["h"])
    ref = jnp.concatenate([node_feat], axis=-1)
    assert h.shape == ref.shape, (h.shape, ref.shape)
    assert jnp.allclose(h, ref), "K==1 fast path mismatch"

    # 2) K > 1, narrow unaligned dims + mixed dtypes (exercises the register
    #    concat path and the in-kernel cast).
    extra_keys = jax.random.split(k_extra, net_params["n_iter"])
    feat_list = [node_feat]
    for i, kk in enumerate(extra_keys):
        dt = jnp.bfloat16 if i == 0 else jnp.float32
        feat_list.append(jax.random.normal(kk, (N, D), dtype=jnp.float32).astype(dt))
    h_multi = jax.block_until_ready(concat_feat_list_pallas(feat_list))
    ref_multi = jnp.concatenate(feat_list, axis=-1)
    assert h_multi.shape == ref_multi.shape, (h_multi.shape, ref_multi.shape)
    assert jnp.allclose(h_multi, ref_multi), "Pallas concat kernel mismatch (unaligned)"

    # 3) K > 1, 128-aligned dims and enough rows for a multi-step (even) grid
    #    (exercises the direct-slab-store path and the pipelined grid).
    N_big, D_big, K_big = 1536, 128, 3
    big_keys = jax.random.split(k_big, K_big)
    big_list = [jax.random.normal(kk, (N_big, D_big), dtype=jnp.float32)
                for kk in big_keys]
    h_big = jax.block_until_ready(concat_feat_list_pallas(big_list))
    ref_big = jnp.concatenate(big_list, axis=-1)
    assert h_big.shape == ref_big.shape, (h_big.shape, ref_big.shape)
    assert jnp.allclose(h_big, ref_big), "Pallas concat kernel mismatch (aligned)"

    print("KERNEL_OK")
</pallas_src>

<mosaic_0001>
module attributes {stable_mosaic.version = 11 : i64} {
  func.func @kernel(%arg0: i32, %arg1: memref<64x32xf32, #tpu.memory_space<vmem>>, %arg2: memref<64x32xbf16, #tpu.memory_space<vmem>>, %arg3: memref<64x32xf32, #tpu.memory_space<vmem>>, %arg4: memref<64x32xf32, #tpu.memory_space<vmem>>, %arg5: memref<64x128xf32, #tpu.memory_space<vmem>>) attributes {dimension_semantics = [#tpu.dimension_semantics<parallel>], iteration_bounds = array<i64: 1>, scalar_prefetch = 0 : i64, scratch_operands = 0 : i64, tpu.core_type = #tpu.core_type<tc>, window_params = [{transform_indices = @transform_0, window_bounds = array<i64: 64, 32>}, {transform_indices = @transform_1, window_bounds = array<i64: 64, 32>}, {transform_indices = @transform_2, window_bounds = array<i64: 64, 32>}, {transform_indices = @transform_3, window_bounds = array<i64: 64, 32>}, {transform_indices = @transform_4, window_bounds = array<i64: 64, 128>}]} {
    %c0 = arith.constant 0 : index
    %c0_0 = arith.constant 0 : index
    %0 = vector.load %arg1[%c0, %c0_0] : memref<64x32xf32, #tpu.memory_space<vmem>>, vector<64x32xf32>
    %c0_1 = arith.constant 0 : index
    %c0_2 = arith.constant 0 : index
    %1 = vector.load %arg2[%c0_1, %c0_2] : memref<64x32xbf16, #tpu.memory_space<vmem>>, vector<64x32xbf16>
    %2 = arith.extf %1 : vector<64x32xbf16> to vector<64x32xf32>
    %c0_3 = arith.constant 0 : index
    %c0_4 = arith.constant 0 : index
    %3 = vector.load %arg3[%c0_3, %c0_4] : memref<64x32xf32, #tpu.memory_space<vmem>>, vector<64x32xf32>
    %c0_5 = arith.constant 0 : index
    %c0_6 = arith.constant 0 : index
    %4 = vector.load %arg4[%c0_5, %c0_6] : memref<64x32xf32, #tpu.memory_space<vmem>>, vector<64x32xf32>
    %5 = tpu.concatenate %0, %2, %3, %4 in 1 : vector<64x32xf32>, vector<64x32xf32>, vector<64x32xf32>, vector<64x32xf32> -> vector<64x128xf32>
    %c0_7 = arith.constant 0 : index
    %c0_8 = arith.constant 0 : index
    %6 = vector.load %arg5[%c0_7, %c0_8] : memref<64x128xf32, #tpu.memory_space<vmem>>, vector<64x128xf32>
    tpu.vector_store %arg5[%c0_7, %c0_8], %5 {strides = array<i32>} : memref<64x128xf32, #tpu.memory_space<vmem>>, vector<64x128xf32>,
    return
  }
  func.func @transform_0(%arg0: i32) -> (i32, i32) {
    %c0_i32 = arith.constant 0 : i32
    %c0_i32_0 = arith.constant 0 : i32
    return %arg0, %c0_i32 : i32, i32
  }
  func.func @transform_1(%arg0: i32) -> (i32, i32) {
    %c0_i32 = arith.constant 0 : i32
    %c0_i32_0 = arith.constant 0 : i32
    return %arg0, %c0_i32 : i32, i32
  }
  func.func @transform_2(%arg0: i32) -> (i32, i32) {
    %c0_i32 = arith.constant 0 : i32
    %c0_i32_0 = arith.constant 0 : i32
    return %arg0, %c0_i32 : i32, i32
  }
  func.func @transform_3(%arg0: i32) -> (i32, i32) {
    %c0_i32 = arith.constant 0 : i32
    %c0_i32_0 = arith.constant 0 : i32
    return %arg0, %c0_i32 : i32, i32
  }
  func.func @transform_4(%arg0: i32) -> (i32, i32) {
    %c0_i32 = arith.constant 0 : i32
    %c0_i32_0 = arith.constant 0 : i32
    return %arg0, %c0_i32 : i32, i32
  }
}

</mosaic_0001>

<llo_original>
// kernel: tpu_custom_call.1
$region0: #{tpu_custom_call.1}
  #allocation0 [shape = 'u32[]', space=smem, size = 0x4, offset = 0x4, fixed_abs, tag = 'smem constant byte address 0x4 - core index']
  #allocation1 [shape = 'u32[144,128]{1,0:T(1,128)}', space=vmem, size = 0x12000, scoped, tag = 'internal scratch']
  %s0 = inlined_call_operand.vmem [shape: f32[64,32], index: 0, kind: input, shape index: {}]
  %s1 = inlined_call_operand.vmem [shape: bf16[64,32], index: 1, kind: input, shape index: {}]
  %s2 = inlined_call_operand.vmem [shape: f32[64,32], index: 2, kind: input, shape index: {}]
  %s3 = inlined_call_operand.vmem [shape: f32[64,32], index: 3, kind: input, shape index: {}]
  %s4 = inlined_call_operand.hbm [shape: f32[64,128], index: 4, kind: output, shape index: {}]
  %s5 = sld [smem:[#allocation0]]
  $region26: #{tpu_custom_call.1} parent=0
    _
  %s7 = ssub.s32 1, %s5
  %s8 = scalar_select 0, %s7, %s5
  $region1: #{tpu_custom_call.1} parent=0
    #allocation2 [shape = 'u8[32768]{0}', space=vmem, size = 0x8000, scoped, tag = 'output window, operand 0, single buffered']
    #allocation3 [shape = 's32[1]{0}', space=sflag, size = 0x4, scoped, tag = 'scoped memory for tpu_custom_call.1']
    %9 = vsyncpa [#allocation3], 0
    // Predicated region
    $region2: #{tpu_custom_call.1} parent=1 // pred_check
      _
    $region3: #{tpu_custom_call.1} parent=1 // pred_check_branch
      %11 = sbr.rel (0) target = $region5
    $region4: #{tpu_custom_call.1} parent=1 // pred_region
      _
    $region5: #{tpu_custom_call.1} parent=1 // pred_fallthru
      _
    // Predicated region
    $region6: #{tpu_custom_call.1} parent=1 // pred_check
      _
    $region7: #{tpu_custom_call.1} parent=1 // pred_check_branch
      %13 = sbr.rel (0) target = $region9
    $region8: #{tpu_custom_call.1} parent=1 // pred_region
      _
    $region9: #{tpu_custom_call.1} parent=1 // pred_fallthru
      _
    // Predicated region
    $region10: #{tpu_custom_call.1} parent=1 // pred_check
      _
    $region11: #{tpu_custom_call.1} parent=1 // pred_check_branch
      %15 = sbr.rel (0) target = $region13
    $region12: #{tpu_custom_call.1} parent=1 // pred_region
      _
    $region13: #{tpu_custom_call.1} parent=1 // pred_fallthru
      _
    // Predicated region
    $region14: #{tpu_custom_call.1} parent=1 // pred_check
      _
    $region15: #{tpu_custom_call.1} parent=1 // pred_check_branch
      %17 = sbr.rel (0) target = $region17
    $region16: #{tpu_custom_call.1} parent=1 // pred_region
      _
    $region17: #{tpu_custom_call.1} parent=1 // pred_fallthru
      _
    %v18 = vld [vmem:[%s0] sm:$0xff]
    %v19 = vld [vmem:[%s0 + $0x8] sm:$0xff]
    %v20 = vld [vmem:[%s0 + $0x10] sm:$0xff]
    %v21 = vld [vmem:[%s0 + $0x18] sm:$0xff]
    %v22 = vld [vmem:[%s0 + $0x20] sm:$0xff]
    %v23 = vld [vmem:[%s0 + $0x28] sm:$0xff]
    %v24 = vld [vmem:[%s0 + $0x30] sm:$0xff]
    %v25 = vld [vmem:[%s0 + $0x38] sm:$0xff]
    %v26 = vld [vmem:[%s1] sm:$0xf]
    %v27 = vld [vmem:[%s1 + $0x4] sm:$0xf]
    %v28 = vld [vmem:[%s1 + $0x8] sm:$0xf]
    %v29 = vld [vmem:[%s1 + $0xc] sm:$0xf]
    %v30 = vld [vmem:[%s1 + $0x10] sm:$0xf]
    %v31 = vld [vmem:[%s1 + $0x14] sm:$0xf]
    %v32 = vld [vmem:[%s1 + $0x18] sm:$0xf]
    %v33 = vld [vmem:[%s1 + $0x1c] sm:$0xf]
    %v34 = vunpack.c.l.bf16 %v26
    %v35 = vunpack.c.l.bf16 %v27
    %v36 = vunpack.c.l.bf16 %v28
    %v37 = vunpack.c.l.bf16 %v29
    %v38 = vunpack.c.l.bf16 %v30
    %v39 = vunpack.c.l.bf16 %v31
    %v40 = vunpack.c.l.bf16 %v32
    %v41 = vunpack.c.l.bf16 %v33
    %v42 = vld [vmem:[%s2] sm:$0xff]
    %v43 = vld [vmem:[%s2 + $0x8] sm:$0xff]
    %v44 = vld [vmem:[%s2 + $0x10] sm:$0xff]
    %v45 = vld [vmem:[%s2 + $0x18] sm:$0xff]
    %v46 = vld [vmem:[%s2 + $0x20] sm:$0xff]
    %v47 = vld [vmem:[%s2 + $0x28] sm:$0xff]
    %v48 = vld [vmem:[%s2 + $0x30] sm:$0xff]
    %v49 = vld [vmem:[%s2 + $0x38] sm:$0xff]
    %v50 = vld [vmem:[%s3] sm:$0xff]
    %v51 = vld [vmem:[%s3 + $0x8] sm:$0xff]
    %v52 = vld [vmem:[%s3 + $0x10] sm:$0xff]
    %v53 = vld [vmem:[%s3 + $0x18] sm:$0xff]
    %v54 = vld [vmem:[%s3 + $0x20] sm:$0xff]
    %v55 = vld [vmem:[%s3 + $0x28] sm:$0xff]
    %v56 = vld [vmem:[%s3 + $0x30] sm:$0xff]
    %v57 = vld [vmem:[%s3 + $0x38] sm:$0xff]
    %66 = vrot.lane.b32.xlu0 %v34, 32
    %v67 = vpop.permute.xlu0 %66
    %68 = vrot.lane.b32.xlu0 %v35, 32
    %v69 = vpop.permute.xlu0 %68
    %70 = vrot.lane.b32.xlu0 %v36, 32
    %v71 = vpop.permute.xlu0 %70
    %72 = vrot.lane.b32.xlu0 %v37, 32
    %v73 = vpop.permute.xlu0 %72
    %74 = vrot.lane.b32.xlu0 %v38, 32
    %v75 = vpop.permute.xlu0 %74
    %76 = vrot.lane.b32.xlu0 %v39, 32
    %v77 = vpop.permute.xlu0 %76
    %78 = vrot.lane.b32.xlu0 %v40, 32
    %v79 = vpop.permute.xlu0 %78
    %80 = vrot.lane.b32.xlu0 %v41, 32
    %v81 = vpop.permute.xlu0 %80
    %98 = vrot.lane.b32.xlu0 %v42, 64
    %v99 = vpop.permute.xlu0 %98
    %100 = vrot.lane.b32.xlu0 %v43, 64
    %v101 = vpop.permute.xlu0 %100
    %102 = vrot.lane.b32.xlu0 %v44, 64
    %v103 = vpop.permute.xlu0 %102
    %104 = vrot.lane.b32.xlu0 %v45, 64
    %v105 = vpop.permute.xlu0 %104
    %106 = vrot.lane.b32.xlu0 %v46, 64
    %v107 = vpop.permute.xlu0 %106
    %108 = vrot.lane.b32.xlu0 %v47, 64
    %v109 = vpop.permute.xlu0 %108
    %110 = vrot.lane.b32.xlu0 %v48, 64
    %v111 = vpop.permute.xlu0 %110
    %112 = vrot.lane.b32.xlu0 %v49, 64
    %v113 = vpop.permute.xlu0 %112
    %130 = vrot.lane.b32.xlu0 %v50, 96
    %v131 = vpop.permute.xlu0 %130
    %132 = vrot.lane.b32.xlu0 %v51, 96
    %v133 = vpop.permute.xlu0 %132
    %134 = vrot.lane.b32.xlu0 %v52, 96
    %v135 = vpop.permute.xlu0 %134
    %136 = vrot.lane.b32.xlu0 %v53, 96
    %v137 = vpop.permute.xlu0 %136
    %138 = vrot.lane.b32.xlu0 %v54, 96
    %v139 = vpop.permute.xlu0 %138
    %140 = vrot.lane.b32.xlu0 %v55, 96
    %v141 = vpop.permute.xlu0 %140
    %142 = vrot.lane.b32.xlu0 %v56, 96
    %v143 = vpop.permute.xlu0 %142
    %144 = vrot.lane.b32.xlu0 %v57, 96
    %v145 = vpop.permute.xlu0 %144
    %vm154 = vcmask 261120
    %v155 = vsel %vm154, %v18, %v67
    %v156 = vsel %vm154, %v19, %v69
    %v157 = vsel %vm154, %v20, %v71
    %v158 = vsel %vm154, %v21, %v73
    %v159 = vsel %vm154, %v22, %v75
    %v160 = vsel %vm154, %v23, %v77
    %v161 = vsel %vm154, %v24, %v79
    %v162 = vsel %vm154, %v25, %v81
    %vm163 = vcmask 523264
    %v164 = vsel %vm163, %v155, %v99
    %v165 = vsel %vm163, %v156, %v101
    %v166 = vsel %vm163, %v157, %v103
    %v167 = vsel %vm163, %v158, %v105
    %v168 = vsel %vm163, %v159, %v107
    %v169 = vsel %vm163, %v160, %v109
    %v170 = vsel %vm163, %v161, %v111
    %v171 = vsel %vm163, %v162, %v113
    %vm172 = vcmask 785408
    %v173 = vsel %vm172, %v164, %v131
    %v174 = vsel %vm172, %v165, %v133
    %v175 = vsel %vm172, %v166, %v135
    %v176 = vsel %vm172, %v167, %v137
    %v177 = vsel %vm172, %v168, %v139
    %v178 = vsel %vm172, %v169, %v141
    %v179 = vsel %vm172, %v170, %v143
    %v180 = vsel %vm172, %v171, %v145
    %181 = vst [vmem:[#allocation2] sm:$0xff] %v173
    %182 = vst [vmem:[#allocation2 + $0x8] sm:$0xff] %v174
    %183 = vst [vmem:[#allocation2 + $0x10] sm:$0xff] %v175
    %184 = vst [vmem:[#allocation2 + $0x18] sm:$0xff] %v176
    %185 = vst [vmem:[#allocation2 + $0x20] sm:$0xff] %v177
    %186 = vst [vmem:[#allocation2 + $0x28] sm:$0xff] %v178
    %187 = vst [vmem:[#allocation2 + $0x30] sm:$0xff] %v179
    %188 = vst [vmem:[#allocation2 + $0x38] sm:$0xff] %v180
    // Predicated region
    $region18: #{tpu_custom_call.1} parent=1 // pred_check
      _
    $region19: #{tpu_custom_call.1} parent=1 // pred_check_branch
      %190 = sbr.rel (0) target = $region21
    $region20: #{tpu_custom_call.1} parent=1 // pred_region
      %s192 = ssub.s32 1024, 1024
      %193 = vsyncadd [#allocation3], %s192
      %s194 = sshll.u32 [#allocation2], 4
      %s195 = int_to_ptr.vmem [resolvable:$true] %s194
      %200 = dma.vmem_to_hbm [thread:$0]  %s195, 1024, %s4, [#allocation3], 128, 128, 8
    $region21: #{tpu_custom_call.1} parent=1 // pred_fallthru
      _
    // Predicated region
    $region22: #{tpu_custom_call.1} parent=1 // pred_check
      _
    $region23: #{tpu_custom_call.1} parent=1 // pred_check_branch
      %202 = sbr.rel (0) target = $region25
    $region24: #{tpu_custom_call.1} parent=1 // pred_region
      %203 = dma.done [#allocation3], 1024
    $region25: #{tpu_custom_call.1} parent=1 // pred_fallthru
      _
    %204 = vsyncpa [#allocation3], 1

</llo_original>
